<compile_context>
chip_gen: v7x
topology: tpu7x:2x2x1
jax: 0.10.0
libtpu: 0.0.40
codegen_flags: <defaults>
</compile_context>

<pallas_src>
import functools

import jax
import jax.numpy as jnp
from jax import lax
from jax.experimental import pallas as pl
from jax.experimental.pallas import tpu as pltpu


def _round_up(x: int, m: int) -> int:
    return (x + m - 1) // m * m


def _ccel_kernel(logits_ref, target_ref, weight_ref, num_ref, den_ref, *,
                 ignore_index: int):
    # num_ref / den_ref are (1, 1) SMEM scalars resident across the grid
    # (output index_map returns the same block every step -> accumulators).
    @pl.when(pl.program_id(0) == 0)
    def _():
        num_ref[0, 0] = jnp.float32(0.0)
        den_ref[0, 0] = jnp.float32(0.0)

    x = logits_ref[...].astype(jnp.float32)        # (tile_n, C)
    t = target_ref[...]                            # (tile_n, 1) int32
    w = weight_ref[...].astype(jnp.float32)        # (1, C)

    # softmax over classes (last dim), numerically stable.
    m = jnp.max(x, axis=-1, keepdims=True)
    e = jnp.exp(x - m)
    s = jnp.sum(e, axis=-1, keepdims=True)
    p = e / s
    comp_log = jnp.log(1.0 - p + 0.0001)           # (tile_n, C)

    # Gather comp_log[n, t_n] and weight[t_n] via a one-hot lane mask.
    cls = lax.broadcasted_iota(jnp.int32, x.shape, 1)
    onehot = cls == t                              # (tile_n, C)
    picked = jnp.sum(jnp.where(onehot, comp_log, 0.0), axis=-1, keepdims=True)
    w_row = jnp.sum(jnp.where(onehot, w, 0.0), axis=-1, keepdims=True)

    valid = t != ignore_index                      # (tile_n, 1)
    num_ref[0, 0] += jnp.sum(jnp.where(valid, -w_row * picked, 0.0))
    den_ref[0, 0] += jnp.sum(jnp.where(valid, w_row, 0.0))


@functools.partial(jax.jit, static_argnames=("ignore_index", "size_average"))
def _complement_cross_entropy(logits, target, weight, *, ignore_index,
                              size_average):
    n, c = logits.shape

    tile_n = 256 if n >= 256 else _round_up(n, 8)
    n_pad = _round_up(n, tile_n)

    tgt = target.astype(jnp.int32).reshape(n, 1)
    if n_pad != n:
        # Padded rows carry ignore_index -> masked out inside the kernel.
        logits = jnp.pad(logits, ((0, n_pad - n), (0, 0)))
        tgt = jnp.pad(tgt, ((0, n_pad - n), (0, 0)),
                      constant_values=ignore_index)

    w2d = weight.astype(jnp.float32).reshape(1, c)

    kernel = functools.partial(_ccel_kernel, ignore_index=ignore_index)
    num, den = pl.pallas_call(
        kernel,
        out_shape=(jax.ShapeDtypeStruct((1, 1), jnp.float32),
                   jax.ShapeDtypeStruct((1, 1), jnp.float32)),
        grid_spec=pltpu.PrefetchScalarGridSpec(
            num_scalar_prefetch=0,
            grid=(n_pad // tile_n,),
            in_specs=[
                pl.BlockSpec((tile_n, c), lambda i: (i, 0)),
                pl.BlockSpec((tile_n, 1), lambda i: (i, 0)),
                pl.BlockSpec((1, c), lambda i: (0, 0)),
            ],
            out_specs=[
                pl.BlockSpec((1, 1), lambda i: (0, 0),
                             memory_space=pltpu.SMEM),
                pl.BlockSpec((1, 1), lambda i: (0, 0),
                             memory_space=pltpu.SMEM),
            ],
        ),
        compiler_params=pltpu.CompilerParams(
            dimension_semantics=("arbitrary",)),  # reduction axis
    )(logits, tgt, w2d)

    total = num[0, 0]
    if size_average:
        return total / den[0, 0]
    return total


class ComplementCrossEntropyLoss:
    """JAX/Pallas port of GenerativeModels/BGAN/libs.py::ComplementCrossEntropyLoss."""

    def __init__(self, device=None, except_index=None, weight=None,
                 ignore_index=-100, size_average=True):
        # `device` is kept for signature parity; JAX manages placement.
        self.except_index = except_index
        self.weight = weight
        self.ignore_index = ignore_index
        self.size_average = size_average
        self.device = device

    def __call__(self, input, target=None):
        n, c = input.shape
        if target is None:
            assert self.except_index is not None, "except_index cannot be None!"
            target = jnp.full((n,), self.except_index, dtype=jnp.int32)
        weight = (self.weight if self.weight is not None
                  else jnp.ones((c,), jnp.float32))
        return _complement_cross_entropy(
            input, target, weight,
            ignore_index=self.ignore_index,
            size_average=self.size_average)


def _reference_loss(logits, target, weight, ignore_index, size_average):
    """Plain-JAX reference matching torch's nll_loss(log(1 - softmax + 1e-4))."""
    p = jax.nn.softmax(logits.astype(jnp.float32), axis=1)
    l = jnp.log(1.0 - p + 0.0001)
    picked = l[jnp.arange(logits.shape[0]), target]
    w = weight[target]
    valid = target != ignore_index
    num = jnp.sum(jnp.where(valid, -w * picked, 0.0))
    den = jnp.sum(jnp.where(valid, w, 0.0))
    return num / den if size_average else num


if __name__ == "__main__":
    key = jax.random.PRNGKey(0)
    k1, k2, k3, k4 = jax.random.split(key, 4)

    # Case 1: default-target path (all rows labeled except_index), small ragged
    # batch to exercise row padding. input: (batch=37, classes=10).
    logits1 = jax.random.normal(k1, (37, 10), dtype=jnp.float32)
    loss_fn1 = ComplementCrossEntropyLoss(device=None, except_index=3)
    out1 = jax.block_until_ready(loss_fn1(logits1))
    tgt1 = jnp.full((37,), 3, dtype=jnp.int32)
    ref1 = _reference_loss(logits1, tgt1, jnp.ones((10,), jnp.float32),
                           ignore_index=-100, size_average=True)
    assert jnp.allclose(out1, ref1, rtol=1e-5, atol=1e-5), (out1, ref1)

    # Case 2: explicit targets (including ignored rows), multi-tile grid.
    # input: (batch=300, classes=33).
    logits2 = jax.random.normal(k2, (300, 33), dtype=jnp.float32)
    tgt2 = jax.random.randint(k3, (300,), 0, 33, dtype=jnp.int32)
    tgt2 = tgt2.at[::7].set(-100)  # some ignored rows
    loss_fn2 = ComplementCrossEntropyLoss(device=None, except_index=0)
    out2 = jax.block_until_ready(loss_fn2(logits2, tgt2))
    ref2 = _reference_loss(logits2, tgt2, jnp.ones((33,), jnp.float32),
                           ignore_index=-100, size_average=True)
    assert jnp.allclose(out2, ref2, rtol=1e-5, atol=1e-5), (out2, ref2)

    # Case 3: class weights + size_average=False.
    weight3 = jax.random.uniform(k4, (10,), dtype=jnp.float32) + 0.5
    loss_fn3 = ComplementCrossEntropyLoss(device=None, except_index=1,
                                          weight=weight3, size_average=False)
    out3 = jax.block_until_ready(loss_fn3(logits1))
    tgt3 = jnp.full((37,), 1, dtype=jnp.int32)
    ref3 = _reference_loss(logits1, tgt3, weight3,
                           ignore_index=-100, size_average=False)
    assert jnp.allclose(out3, ref3, rtol=1e-5, atol=1e-5), (out3, ref3)

    print("KERNEL_OK")
</pallas_src>

<mosaic_0001>
module attributes {stable_mosaic.version = 11 : i64} {
  func.func @_ccel_kernel(%arg0: i32, %arg1: memref<40x10xf32, #tpu.memory_space<vmem>>, %arg2: memref<40x1xi32, #tpu.memory_space<vmem>>, %arg3: memref<1x10xf32, #tpu.memory_space<vmem>>, %arg4: memref<1x1xf32, #tpu.memory_space<smem>>, %arg5: memref<1x1xf32, #tpu.memory_space<smem>>) attributes {dimension_semantics = [#tpu.dimension_semantics<arbitrary>], iteration_bounds = array<i64: 1>, scalar_prefetch = 0 : i64, scratch_operands = 0 : i64, tpu.core_type = #tpu.core_type<tc>, window_params = [{transform_indices = @transform_0, window_bounds = array<i64: 40, 10>}, {transform_indices = @transform_1, window_bounds = array<i64: 40, 1>}, {pipeline_mode = #tpu.pipeline_mode<synchronous>, transform_indices = @transform_2, window_bounds = array<i64: 1, 10>}, {transform_indices = @transform_3, window_bounds = array<i64: 1, 1>}, {transform_indices = @transform_4, window_bounds = array<i64: 1, 1>}]} {
    %c0_i32 = arith.constant 0 : i32
    %0 = arith.cmpi eq, %arg0, %c0_i32 : i32
    %1 = arith.extui %0 : i1 to i32
    %c0_i32_0 = arith.constant 0 : i32
    %2 = arith.cmpi ne, %1, %c0_i32_0 : i32
    scf.if %2 {
      %cst_26 = arith.constant 0.000000e+00 : f32
      %c0_27 = arith.constant 0 : index
      %c0_28 = arith.constant 0 : index
      %56 = memref.load %arg4[%c0_27, %c0_28] : memref<1x1xf32, #tpu.memory_space<smem>>
      memref.store %cst_26, %arg4[%c0_27, %c0_28] : memref<1x1xf32, #tpu.memory_space<smem>>
      %cst_29 = arith.constant 0.000000e+00 : f32
      %c0_30 = arith.constant 0 : index
      %c0_31 = arith.constant 0 : index
      %57 = memref.load %arg5[%c0_30, %c0_31] : memref<1x1xf32, #tpu.memory_space<smem>>
      memref.store %cst_29, %arg5[%c0_30, %c0_31] : memref<1x1xf32, #tpu.memory_space<smem>>
    } else {
    }
    %c0 = arith.constant 0 : index
    %c0_1 = arith.constant 0 : index
    %3 = vector.load %arg1[%c0, %c0_1] : memref<40x10xf32, #tpu.memory_space<vmem>>, vector<40x10xf32>
    %c0_2 = arith.constant 0 : index
    %c0_3 = arith.constant 0 : index
    %4 = vector.load %arg2[%c0_2, %c0_3] : memref<40x1xi32, #tpu.memory_space<vmem>>, vector<40x1xi32>
    %c0_4 = arith.constant 0 : index
    %c0_5 = arith.constant 0 : index
    %5 = vector.load %arg3[%c0_4, %c0_5] : memref<1x10xf32, #tpu.memory_space<vmem>>, vector<1x10xf32>
    %cst = arith.constant dense<0xFF800000> : vector<40xf32>
    %6 = vector.multi_reduction <maximumf>, %3, %cst [1] : vector<40x10xf32> to vector<40xf32>
    %7 = vector.shape_cast %6 : vector<40xf32> to vector<40x1xf32>
    %8 = vector.broadcast %7 : vector<40x1xf32> to vector<40x10xf32>
    %9 = arith.subf %3, %8 : vector<40x10xf32>
    %10 = math.exp %9 : vector<40x10xf32>
    %cst_6 = arith.constant dense<0.000000e+00> : vector<40xf32>
    %11 = vector.multi_reduction <add>, %10, %cst_6 [1] : vector<40x10xf32> to vector<40xf32>
    %12 = vector.shape_cast %11 : vector<40xf32> to vector<40x1xf32>
    %13 = vector.broadcast %12 : vector<40x1xf32> to vector<40x10xf32>
    %14 = arith.divf %10, %13 : vector<40x10xf32>
    %cst_7 = arith.constant 1.000000e+00 : f32
    %15 = vector.broadcast %cst_7 : f32 to vector<40x10xf32>
    %16 = arith.subf %15, %14 : vector<40x10xf32>
    %cst_8 = arith.constant 9.99999974E-5 : f32
    %17 = vector.broadcast %cst_8 : f32 to vector<40x10xf32>
    %18 = arith.addf %16, %17 : vector<40x10xf32>
    %19 = math.log %18 : vector<40x10xf32>
    %20 = tpu.iota {dimensions = array<i32: 1>} : vector<40x10xi32>
    %21 = vector.broadcast %4 : vector<40x1xi32> to vector<40x10xi32>
    %22 = arith.cmpi eq, %20, %21 : vector<40x10xi32>
    %cst_9 = arith.constant 0.000000e+00 : f32
    %23 = vector.broadcast %cst_9 : f32 to vector<40x10xf32>
    %24 = arith.select %22, %19, %23 : vector<40x10xi1>, vector<40x10xf32>
    %cst_10 = arith.constant dense<0.000000e+00> : vector<40xf32>
    %25 = vector.multi_reduction <add>, %24, %cst_10 [1] : vector<40x10xf32> to vector<40xf32>
    %26 = vector.shape_cast %25 : vector<40xf32> to vector<40x1xf32>
    %cst_11 = arith.constant 0.000000e+00 : f32
    %27 = vector.shape_cast %5 : vector<1x10xf32> to vector<1x10xf32>
    %28 = vector.broadcast %27 : vector<1x10xf32> to vector<40x10xf32>
    %29 = vector.broadcast %cst_11 : f32 to vector<40x10xf32>
    %30 = arith.select %22, %28, %29 : vector<40x10xi1>, vector<40x10xf32>
    %cst_12 = arith.constant dense<0.000000e+00> : vector<40xf32>
    %31 = vector.multi_reduction <add>, %30, %cst_12 [1] : vector<40x10xf32> to vector<40xf32>
    %32 = vector.shape_cast %31 : vector<40xf32> to vector<40x1xf32>
    %c-100_i32 = arith.constant -100 : i32
    %33 = vector.broadcast %c-100_i32 : i32 to vector<40x1xi32>
    %34 = arith.cmpi ne, %4, %33 : vector<40x1xi32>
    %c0_13 = arith.constant 0 : index
    %c0_14 = arith.constant 0 : index
    %35 = memref.load %arg4[%c0_13, %c0_14] : memref<1x1xf32, #tpu.memory_space<smem>>
    %cst_15 = arith.constant 0.000000e+00 : f32
    %36 = vector.broadcast %cst_15 : f32 to vector<40x1xf32>
    %37 = arith.subf %36, %32 : vector<40x1xf32>
    %38 = arith.mulf %37, %26 : vector<40x1xf32>
    %cst_16 = arith.constant 0.000000e+00 : f32
    %39 = vector.broadcast %cst_16 : f32 to vector<40x1xf32>
    %40 = arith.select %34, %38, %39 : vector<40x1xi1>, vector<40x1xf32>
    %41 = vector.shape_cast %40 : vector<40x1xf32> to vector<1x40x1xf32>
    %cst_17 = arith.constant dense<0.000000e+00> : vector<1xf32>
    %42 = vector.multi_reduction <add>, %41, %cst_17 [1, 2] : vector<1x40x1xf32> to vector<1xf32>
    %43 = vector.shape_cast %42 : vector<1xf32> to vector<1x1x1xf32>
    %44 = vector.extract %43[0, 0, 0] : f32 from vector<1x1x1xf32>
    %45 = arith.addf %35, %44 : f32
    %c0_18 = arith.constant 0 : index
    %c0_19 = arith.constant 0 : index
    %46 = memref.load %arg4[%c0_18, %c0_19] : memref<1x1xf32, #tpu.memory_space<smem>>
    memref.store %45, %arg4[%c0_18, %c0_19] : memref<1x1xf32, #tpu.memory_space<smem>>
    %c0_20 = arith.constant 0 : index
    %c0_21 = arith.constant 0 : index
    %47 = memref.load %arg5[%c0_20, %c0_21] : memref<1x1xf32, #tpu.memory_space<smem>>
    %cst_22 = arith.constant 0.000000e+00 : f32
    %48 = vector.broadcast %cst_22 : f32 to vector<40x1xf32>
    %49 = arith.select %34, %32, %48 : vector<40x1xi1>, vector<40x1xf32>
    %50 = vector.shape_cast %49 : vector<40x1xf32> to vector<1x40x1xf32>
    %cst_23 = arith.constant dense<0.000000e+00> : vector<1xf32>
    %51 = vector.multi_reduction <add>, %50, %cst_23 [1, 2] : vector<1x40x1xf32> to vector<1xf32>
    %52 = vector.shape_cast %51 : vector<1xf32> to vector<1x1x1xf32>
    %53 = vector.extract %52[0, 0, 0] : f32 from vector<1x1x1xf32>
    %54 = arith.addf %47, %53 : f32
    %c0_24 = arith.constant 0 : index
    %c0_25 = arith.constant 0 : index
    %55 = memref.load %arg5[%c0_24, %c0_25] : memref<1x1xf32, #tpu.memory_space<smem>>
    memref.store %54, %arg5[%c0_24, %c0_25] : memref<1x1xf32, #tpu.memory_space<smem>>
    return
  }
  func.func @transform_0(%arg0: i32) -> (i32, i32) {
    %c0_i32 = arith.constant 0 : i32
    %c0_i32_0 = arith.constant 0 : i32
    return %arg0, %c0_i32 : i32, i32
  }
  func.func @transform_1(%arg0: i32) -> (i32, i32) {
    %c0_i32 = arith.constant 0 : i32
    %c0_i32_0 = arith.constant 0 : i32
    return %arg0, %c0_i32 : i32, i32
  }
  func.func @transform_2(%arg0: i32) -> (i32, i32) {
    %c0_i32 = arith.constant 0 : i32
    %c0_i32_0 = arith.constant 0 : i32
    %c0_i32_1 = arith.constant 0 : i32
    return %c0_i32, %c0_i32_0 : i32, i32
  }
  func.func @transform_3(%arg0: i32) -> (i32, i32) {
    %c0_i32 = arith.constant 0 : i32
    %c0_i32_0 = arith.constant 0 : i32
    %c0_i32_1 = arith.constant 0 : i32
    return %c0_i32, %c0_i32_0 : i32, i32
  }
  func.func @transform_4(%arg0: i32) -> (i32, i32) {
    %c0_i32 = arith.constant 0 : i32
    %c0_i32_0 = arith.constant 0 : i32
    %c0_i32_1 = arith.constant 0 : i32
    return %c0_i32, %c0_i32_0 : i32, i32
  }
}

</mosaic_0001>

<llo_original>
// kernel: _complement_cross_entropy.1
$region0: #{_complement_cross_entropy.1}
  #allocation0 [shape = 'u32[]', space=smem, size = 0x4, offset = 0x4, fixed_abs, tag = 'smem constant byte address 0x4 - core index']
  #allocation1 [shape = 'u32[144,128]{1,0:T(1,128)}', space=vmem, size = 0x12000, scoped, tag = 'internal scratch']
  %s0 = inlined_call_operand.vmem [shape: f32[40,10], index: 0, kind: input, shape index: {}]
  %s1 = inlined_call_operand.vmem [shape: s32[40,1], index: 1, kind: input, shape index: {}]
  %s2 = inlined_call_operand.vmem [shape: f32[1,10], index: 2, kind: input, shape index: {}]
  %s3 = inlined_call_operand.hbm [shape: f32[1,1], index: 3, kind: output, shape index: {0}]
  %s4 = inlined_call_operand.hbm [shape: f32[1,1], index: 4, kind: output, shape index: {1}]
  %5 = xla_tuple %s3, %s4
  %s6 = sld [smem:[#allocation0]]
  $region34: #{_complement_cross_entropy.1} parent=0
    _
  %s8 = ssub.s32 1, %s6
  %s9 = scalar_select 0, %s8, %s6
  $region1: #{_complement_cross_entropy.1} parent=0
    #allocation2 [shape = 'u8[512]{0}', space=smem, size = 0x200, scoped, tag = 'output window, operand 0, single buffered']
    #allocation3 [shape = 's32[1]{0}', space=sflag, size = 0x4, scoped, tag = 'scoped memory for _complement_cross_entropy.1']
    #allocation4 [shape = 'u8[512]{0}', space=smem, size = 0x200, scoped, tag = 'output window, operand 1, single buffered']
    #allocation5 [shape = 's32[1]{0}', space=sflag, size = 0x4, scoped, tag = 'scoped memory for _complement_cross_entropy.1']
    %10 = vsyncpa [#allocation3], 0
    %11 = vsyncpa [#allocation5], 0
    // Predicated region
    $region2: #{_complement_cross_entropy.1} parent=1 // pred_check
      _
    $region3: #{_complement_cross_entropy.1} parent=1 // pred_check_branch
      %13 = sbr.rel (0) target = $region5
    $region4: #{_complement_cross_entropy.1} parent=1 // pred_region
      _
    $region5: #{_complement_cross_entropy.1} parent=1 // pred_fallthru
      _
    // Predicated region
    $region6: #{_complement_cross_entropy.1} parent=1 // pred_check
      _
    $region7: #{_complement_cross_entropy.1} parent=1 // pred_check_branch
      %15 = sbr.rel (0) target = $region9
    $region8: #{_complement_cross_entropy.1} parent=1 // pred_region
      _
    $region9: #{_complement_cross_entropy.1} parent=1 // pred_fallthru
      _
    // Predicated region
    $region10: #{_complement_cross_entropy.1} parent=1 // pred_check
      _
    $region11: #{_complement_cross_entropy.1} parent=1 // pred_check_branch
      %17 = sbr.rel (0) target = $region13
    $region12: #{_complement_cross_entropy.1} parent=1 // pred_region
      _
    $region13: #{_complement_cross_entropy.1} parent=1 // pred_fallthru
      _
    %p18 = scmp.eq.s32.totalorder 0, 0
    // Predicated region
    $region14: #{_complement_cross_entropy.1} parent=1 // pred_check
      %p19 = pneg %p18
    $region15: #{_complement_cross_entropy.1} parent=1 // pred_check_branch
      %21 = sbr.rel (%p19) target = $region17
    $region16: #{_complement_cross_entropy.1} parent=1 // pred_region
      %s22 = scalar_lea.smem [#allocation2], 0
      %23 = sst [smem:[%s22]] 0.0
      %s24 = scalar_lea.smem [#allocation4], 0
      %25 = sst [smem:[%s24]] 0.0
    $region17: #{_complement_cross_entropy.1} parent=1 // pred_fallthru
      _
    %v26 = vld [vmem:[%s0] sm:$0xff]
    %v27 = vld [vmem:[%s0 + $0x8] sm:$0xff]
    %v28 = vld [vmem:[%s0 + $0x10] sm:$0xff]
    %v29 = vld [vmem:[%s0 + $0x18] sm:$0xff]
    %v30 = vld [vmem:[%s0 + $0x20] sm:$0xff]
    %v31 = vld [vmem:[%s1] sm:$0xff]
    %v32 = vld [vmem:[%s1 + $0x8] sm:$0xff]
    %v33 = vld [vmem:[%s1 + $0x10] sm:$0xff]
    %v34 = vld [vmem:[%s1 + $0x18] sm:$0xff]
    %v35 = vld [vmem:[%s1 + $0x20] sm:$0xff]
    %v36 = vld [vmem:[%s2] sm:$0x1]
    %vm37 = vcmask 80896
    %v38 = vsel %vm37, %v26, -inf
    %39 = vmax.xlane.f32.xlu0 %v38
    %v40 = vpop.xlane.xlu0 %39
    %v41 = vsel %vm37, %v27, -inf
    %42 = vmax.xlane.f32.xlu0 %v41
    %v43 = vpop.xlane.xlu0 %42
    %v44 = vsel %vm37, %v28, -inf
    %45 = vmax.xlane.f32.xlu0 %v44
    %v46 = vpop.xlane.xlu0 %45
    %v47 = vsel %vm37, %v29, -inf
    %48 = vmax.xlane.f32.xlu0 %v47
    %v49 = vpop.xlane.xlu0 %48
    %v50 = vsel %vm37, %v30, -inf
    %51 = vmax.xlane.f32.xlu0 %v50
    %v52 = vpop.xlane.xlu0 %51
    %v53 = vsub.f32 %v26, %v40
    %v54 = vsub.f32 %v27, %v43
    %v55 = vsub.f32 %v28, %v46
    %v56 = vsub.f32 %v29, %v49
    %v57 = vsub.f32 %v30, %v52
    %v58 = vmul.f32 %v53, 1.442695
    %v59 = vpow.pop %v58
    %v60 = vmul.f32 %v54, 1.442695
    %v61 = vpow.pop %v60
    %v62 = vmul.f32 %v55, 1.442695
    %v63 = vpow.pop %v62
    %v64 = vmul.f32 %v56, 1.442695
    %v65 = vpow.pop %v64
    %v66 = vmul.f32 %v57, 1.442695
    %v67 = vpow.pop %v66
    %v68 = vsel %vm37, %v59, 0.0
    %69 = vadd.xlane.f32.xlu0 %v68
    %v70 = vpop.xlane.xlu0 %69
    %v71 = vsel %vm37, %v61, 0.0
    %72 = vadd.xlane.f32.xlu0 %v71
    %v73 = vpop.xlane.xlu0 %72
    %v74 = vsel %vm37, %v63, 0.0
    %75 = vadd.xlane.f32.xlu0 %v74
    %v76 = vpop.xlane.xlu0 %75
    %v77 = vsel %vm37, %v65, 0.0
    %78 = vadd.xlane.f32.xlu0 %v77
    %v79 = vpop.xlane.xlu0 %78
    %v80 = vsel %vm37, %v67, 0.0
    %81 = vadd.xlane.f32.xlu0 %v80
    %v82 = vpop.xlane.xlu0 %81
    %v83 = vrcp.pop %v70
    %v84 = vmul.f32 %v59, %v83
    %v85 = vrcp.pop %v73
    %v86 = vmul.f32 %v61, %v85
    %v87 = vrcp.pop %v76
    %v88 = vmul.f32 %v63, %v87
    %v89 = vrcp.pop %v79
    %v90 = vmul.f32 %v65, %v89
    %v91 = vrcp.pop %v82
    %v92 = vmul.f32 %v67, %v91
    %v93 = vsub.f32 1.0, %v84
    %v94 = vsub.f32 1.0, %v86
    %v95 = vsub.f32 1.0, %v88
    %v96 = vsub.f32 1.0, %v90
    %v97 = vsub.f32 1.0, %v92
    %v98 = vadd.f32 %v93, 0.0001
    %v99 = vadd.f32 %v94, 0.0001
    %v100 = vadd.f32 %v95, 0.0001
    %v101 = vadd.f32 %v96, 0.0001
    %v102 = vadd.f32 %v97, 0.0001
    %v103 = vlog2.pop %v98
    %v104 = vmul.f32 %v103, 0.6931472
    %v105 = vlog2.pop %v99
    %v106 = vmul.f32 %v105, 0.6931472
    %v107 = vlog2.pop %v100
    %v108 = vmul.f32 %v107, 0.6931472
    %v109 = vlog2.pop %v101
    %v110 = vmul.f32 %v109, 0.6931472
    %v111 = vlog2.pop %v102
    %v112 = vmul.f32 %v111, 0.6931472
    %v113 = vlaneseq
    %v114 = vand.u32 %v113, 127
    %115 = vset.pattern.permute.xlu0 0
    %116 = vperm.xlu0 %115, %v31
    %v117 = vpop.permute.xlu0 %116
    %118 = vset.pattern.permute.xlu0 0
    %119 = vperm.xlu0 %118, %v32
    %v120 = vpop.permute.xlu0 %119
    %121 = vset.pattern.permute.xlu0 0
    %122 = vperm.xlu0 %121, %v33
    %v123 = vpop.permute.xlu0 %122
    %124 = vset.pattern.permute.xlu0 0
    %125 = vperm.xlu0 %124, %v34
    %v126 = vpop.permute.xlu0 %125
    %127 = vset.pattern.permute.xlu0 0
    %128 = vperm.xlu0 %127, %v35
    %v129 = vpop.permute.xlu0 %128
    %vm130 = vcmp.eq.s32.totalorder %v114, %v117
    %vm131 = vcmp.eq.s32.totalorder %v114, %v120
    %vm132 = vcmp.eq.s32.totalorder %v114, %v123
    %vm133 = vcmp.eq.s32.totalorder %v114, %v126
    %vm134 = vcmp.eq.s32.totalorder %v114, %v129
    %v135 = vsel %vm130, %v104, 0.0
    %v136 = vsel %vm131, %v106, 0.0
    %v137 = vsel %vm132, %v108, 0.0
    %v138 = vsel %vm133, %v110, 0.0
    %v139 = vsel %vm134, %v112, 0.0
    %v140 = vsel %vm37, %v135, 0.0
    %141 = vadd.xlane.f32.xlu0 %v140
    %v142 = vpop.xlane.xlu0 %141
    %v143 = vsel %vm37, %v136, 0.0
    %144 = vadd.xlane.f32.xlu0 %v143
    %v145 = vpop.xlane.xlu0 %144
    %v146 = vsel %vm37, %v137, 0.0
    %147 = vadd.xlane.f32.xlu0 %v146
    %v148 = vpop.xlane.xlu0 %147
    %v149 = vsel %vm37, %v138, 0.0
    %150 = vadd.xlane.f32.xlu0 %v149
    %v151 = vpop.xlane.xlu0 %150
    %v152 = vsel %vm37, %v139, 0.0
    %153 = vadd.xlane.f32.xlu0 %v152
    %v154 = vpop.xlane.xlu0 %153
    %v156 = vlaneseq
    %v157 = vshrl.u32 %v156, 7
    %v158 = vsub.s32 0, %v157
    %v159 = vrot.slane %v36, %v158
    %v161 = vsel %vm130, %v159, 0.0
    %v162 = vsel %vm131, %v159, 0.0
    %v163 = vsel %vm132, %v159, 0.0
    %v164 = vsel %vm133, %v159, 0.0
    %v165 = vsel %vm134, %v159, 0.0
    %v166 = vsel %vm37, %v161, 0.0
    %167 = vadd.xlane.f32.xlu0 %v166
    %v168 = vpop.xlane.xlu0 %167
    %v169 = vsel %vm37, %v162, 0.0
    %170 = vadd.xlane.f32.xlu0 %v169
    %v171 = vpop.xlane.xlu0 %170
    %v172 = vsel %vm37, %v163, 0.0
    %173 = vadd.xlane.f32.xlu0 %v172
    %v174 = vpop.xlane.xlu0 %173
    %v175 = vsel %vm37, %v164, 0.0
    %176 = vadd.xlane.f32.xlu0 %v175
    %v177 = vpop.xlane.xlu0 %176
    %v178 = vsel %vm37, %v165, 0.0
    %179 = vadd.xlane.f32.xlu0 %v178
    %v180 = vpop.xlane.xlu0 %179
    %vm181 = vcmp.ne.s32.totalorder %v31, 4294967196
    %vm182 = vcmp.ne.s32.totalorder %v32, 4294967196
    %vm183 = vcmp.ne.s32.totalorder %v33, 4294967196
    %vm184 = vcmp.ne.s32.totalorder %v34, 4294967196
    %vm185 = vcmp.ne.s32.totalorder %v35, 4294967196
    %s186 = sld [smem:[#allocation2]]
    %v187 = vsub.f32 0.0, %v168
    %v188 = vsub.f32 0.0, %v171
    %v189 = vsub.f32 0.0, %v174
    %v190 = vsub.f32 0.0, %v177
    %v191 = vsub.f32 0.0, %v180
    %v192 = vmul.f32 %v187, %v142
    %v193 = vmul.f32 %v188, %v145
    %v194 = vmul.f32 %v189, %v148
    %v195 = vmul.f32 %v190, %v151
    %v196 = vmul.f32 %v191, %v154
    %v197 = vsel %vm181, %v192, 0.0
    %v198 = vsel %vm182, %v193, 0.0
    %v199 = vsel %vm183, %v194, 0.0
    %v200 = vsel %vm184, %v195, 0.0
    %v201 = vsel %vm185, %v196, 0.0
    %vm202 = vcmask 7168
    %v203 = vsel %vm202, %v197, 0.0
    %v204 = vsel %vm202, %v198, 0.0
    %v205 = vadd.f32 %v203, %v204
    %v206 = vsel %vm202, %v199, 0.0
    %v207 = vadd.f32 %v205, %v206
    %v208 = vsel %vm202, %v200, 0.0
    %v209 = vadd.f32 %v207, %v208
    %v210 = vsel %vm202, %v201, 0.0
    %v211 = vadd.f32 %v209, %v210
    %212 = vadd.xlane.f32.xlu0 %v211
    %v213 = vpop.xlane.xlu0 %212
    %v214 = vrot.slane %v213, 4
    %v215 = vadd.f32 %v213, %v214
    %v216 = vrot.slane %v215, 2
    %v217 = vadd.f32 %v215, %v216
    %v218 = vrot.slane %v217, 1
    %v219 = vadd.f32 %v217, %v218
    %s220 = vtos %v219
    %s221 = sadd.f32 %s186, %s220
    %s222 = scalar_lea.smem [#allocation2], 0
    %223 = sst [smem:[%s222]] %s221
    %s224 = sld [smem:[#allocation4]]
    %v225 = vsel %vm181, %v168, 0.0
    %v226 = vsel %vm182, %v171, 0.0
    %v227 = vsel %vm183, %v174, 0.0
    %v228 = vsel %vm184, %v177, 0.0
    %v229 = vsel %vm185, %v180, 0.0
    %v230 = vsel %vm202, %v225, 0.0
    %v231 = vsel %vm202, %v226, 0.0
    %v232 = vadd.f32 %v230, %v231
    %v233 = vsel %vm202, %v227, 0.0
    %v234 = vadd.f32 %v232, %v233
    %v235 = vsel %vm202, %v228, 0.0
    %v236 = vadd.f32 %v234, %v235
    %v237 = vsel %vm202, %v229, 0.0
    %v238 = vadd.f32 %v236, %v237
    %239 = vadd.xlane.f32.xlu0 %v238
    %v240 = vpop.xlane.xlu0 %239
    %v241 = vrot.slane %v240, 4
    %v242 = vadd.f32 %v240, %v241
    %v243 = vrot.slane %v242, 2
    %v244 = vadd.f32 %v242, %v243
    %v245 = vrot.slane %v244, 1
    %v246 = vadd.f32 %v244, %v245
    %s247 = vtos %v246
    %s248 = sadd.f32 %s224, %s247
    %s249 = scalar_lea.smem [#allocation4], 0
    %250 = sst [smem:[%s249]] %s248
    // Predicated region
    $region18: #{_complement_cross_entropy.1} parent=1 // pred_check
      _
    $region19: #{_complement_cross_entropy.1} parent=1 // pred_check_branch
      %252 = sbr.rel (0) target = $region21
    $region20: #{_complement_cross_entropy.1} parent=1 // pred_region
      %s254 = ssub.s32 16, 16
      %255 = vsyncadd [#allocation3], %s254
      %258 = dma.smem_to_hbm [#allocation2], 16, %s3, [#allocation3]
    $region21: #{_complement_cross_entropy.1} parent=1 // pred_fallthru
      _
    // Predicated region
    $region22: #{_complement_cross_entropy.1} parent=1 // pred_check
      _
    $region23: #{_complement_cross_entropy.1} parent=1 // pred_check_branch
      %260 = sbr.rel (0) target = $region25
    $region24: #{_complement_cross_entropy.1} parent=1 // pred_region
      %s262 = ssub.s32 16, 16
      %263 = vsyncadd [#allocation5], %s262
      %266 = dma.smem_to_hbm [#allocation4], 16, %s4, [#allocation5]
    $region25: #{_complement_cross_entropy.1} parent=1 // pred_fallthru
      _
    // Predicated region
    $region26: #{_complement_cross_entropy.1} parent=1 // pred_check
      _
    $region27: #{_complement_cross_entropy.1} parent=1 // pred_check_branch
      %268 = sbr.rel (0) target = $region29
    $region28: #{_complement_cross_entropy.1} parent=1 // pred_region
      %269 = dma.done [#allocation3], 16
    $region29: #{_complement_cross_entropy.1} parent=1 // pred_fallthru
      _
    // Predicated region
    $region30: #{_complement_cross_entropy.1} parent=1 // pred_check
      _
    $region31: #{_complement_cross_entropy.1} parent=1 // pred_check_branch
      %271 = sbr.rel (0) target = $region33
    $region32: #{_complement_cross_entropy.1} parent=1 // pred_region
      %272 = dma.done [#allocation5], 16
    $region33: #{_complement_cross_entropy.1} parent=1 // pred_fallthru
      _
    %273 = sfence
    %274 = vsyncpa [#allocation3], 1
    %275 = vsyncpa [#allocation5], 1

</llo_original>
